<compile_context>
chip_gen: v7x
topology: tpu7x:2x2x1
jax: 0.10.0
libtpu: 0.0.40
codegen_flags: <defaults>
</compile_context>

<pallas_src>
import jax
import jax.numpy as jnp
from jax.experimental import pallas as pl
from jax.experimental.pallas import tpu as pltpu

LANES = 128
TK_TARGET = 128          # tk * LANES = 16384 elements per class per grid step


def _dice_partial_kernel(p_ref, l_ref, ps_ref, ls_ref, is_ref):
    # p_ref/l_ref: (C, tk, 128); ps/ls/is: (C, 128) per-lane partial sums.
    k = pl.program_id(1)

    @pl.when(k == 0)
    def _():
        ps_ref[...] = jnp.zeros_like(ps_ref)
        ls_ref[...] = jnp.zeros_like(ls_ref)
        is_ref[...] = jnp.zeros_like(is_ref)

    p = p_ref[...].astype(jnp.float32)
    l = l_ref[...].astype(jnp.float32)      # labels.float()

    ps_ref[...] += jnp.sum(p, axis=1)       # sum(probs[:, j])   (per lane)
    ls_ref[...] += jnp.sum(l, axis=1)       # sum(labels[:, j])  (per lane)
    is_ref[...] += jnp.sum(p * l, axis=1)   # sum(probs*labels)  (per lane)


def dice_loss(probs, labels, smooth=1e-6):
    """Pallas implementation of DiceLoss.forward (probs, labels in NCHW)."""
    B, C, H, W = probs.shape
    HW = H * W

    n_rows = pl.cdiv(HW, LANES)
    if n_rows <= TK_TARGET:
        tk = n_rows                       # full-extent block (always legal)
        n_rows_pad = n_rows
    else:
        tk = TK_TARGET
        n_rows_pad = pl.cdiv(n_rows, tk) * tk
    HW_pad = n_rows_pad * LANES

    # Free contiguous views of NCHW -- no transpose, no dtype change in HBM.
    p = probs.reshape(B, C, HW)
    l = labels.reshape(B, C, HW)
    if HW_pad != HW:                      # zero padding is neutral for sums
        pad = ((0, 0), (0, 0), (0, HW_pad - HW))
        p = jnp.pad(p, pad)
        l = jnp.pad(l, pad)
    p = p.reshape(B, C, n_rows_pad, LANES)
    l = l.reshape(B, C, n_rows_pad, LANES)

    nk = n_rows_pad // tk

    in_spec = pl.BlockSpec((None, C, tk, LANES), lambda b, k: (b, 0, k, 0))
    out_spec = pl.BlockSpec((None, C, LANES), lambda b, k: (b, 0, 0))
    out_sds = jax.ShapeDtypeStruct((B, C, LANES), jnp.float32)

    psum, lsum, isum = pl.pallas_call(
        _dice_partial_kernel,
        out_shape=(out_sds, out_sds, out_sds),
        grid_spec=pltpu.PrefetchScalarGridSpec(
            num_scalar_prefetch=0,
            grid=(B, nk),
            in_specs=[in_spec, in_spec],
            out_specs=[out_spec, out_spec, out_spec],
        ),
        compiler_params=pltpu.CompilerParams(
            dimension_semantics=("parallel", "arbitrary")),
    )(p, l)

    # Final combine in plain JAX: O(C) work, negligible.
    p_sum = jnp.sum(psum, axis=(0, 2))
    l_sum = jnp.sum(lsum, axis=(0, 2))
    inter = jnp.sum(isum, axis=(0, 2))
    dice = (2.0 * inter + smooth) / (p_sum + l_sum + inter + smooth)
    per_class = 1.0 - dice                # (C,)  dice_loss_label
    total = jnp.mean(per_class)           # ()    total_dice_loss
    return per_class, total


def _dice_loss_ref(probs, labels, smooth=1e-6):
    """Plain-JAX reference mirroring the PyTorch loop."""
    probs = probs.astype(jnp.float32)
    labels = labels.astype(jnp.float32)
    p_sum = jnp.sum(probs, axis=(0, 2, 3))
    l_sum = jnp.sum(labels, axis=(0, 2, 3))
    inter = jnp.sum(probs * labels, axis=(0, 2, 3))
    dice = (2.0 * inter + smooth) / (p_sum + l_sum + inter + smooth)
    per_class = 1.0 - dice
    return per_class, jnp.mean(per_class)


if __name__ == "__main__":
    key = jax.random.PRNGKey(0)
    k1, k2 = jax.random.split(key)
    B, C, H, W = 2, 4, 16, 16

    # "probs" are softmax-like probabilities; "labels" a one-hot mask.
    logits = jax.random.normal(k1, (B, C, H, W), dtype=jnp.float32)
    probs = jax.nn.softmax(logits, axis=1)
    label_idx = jax.random.randint(k2, (B, H, W), 0, C)
    labels = jax.nn.one_hot(label_idx, C, axis=1, dtype=jnp.float32)

    per_class, total = jax.jit(dice_loss)(probs, labels)
    jax.block_until_ready((per_class, total))

    per_class_ref, total_ref = _dice_loss_ref(probs, labels)
    assert jnp.allclose(per_class, per_class_ref, atol=1e-5, rtol=1e-5)
    assert jnp.allclose(total, total_ref, atol=1e-5, rtol=1e-5)

    print("KERNEL_OK")
</pallas_src>

<mosaic_0001>
module attributes {stable_mosaic.version = 11 : i64} {
  func.func @_dice_partial_kernel(%arg0: i32, %arg1: i32, %arg2: memref<1x4x2x128xf32, #tpu.memory_space<vmem>>, %arg3: memref<1x4x2x128xf32, #tpu.memory_space<vmem>>, %arg4: memref<1x4x128xf32, #tpu.memory_space<vmem>>, %arg5: memref<1x4x128xf32, #tpu.memory_space<vmem>>, %arg6: memref<1x4x128xf32, #tpu.memory_space<vmem>>) attributes {dimension_semantics = [#tpu.dimension_semantics<parallel>, #tpu.dimension_semantics<arbitrary>], iteration_bounds = array<i64: 2, 1>, scalar_prefetch = 0 : i64, scratch_operands = 0 : i64, tpu.core_type = #tpu.core_type<tc>, window_params = [{transform_indices = @transform_0, window_bounds = array<i64: 1, 4, 2, 128>}, {transform_indices = @transform_1, window_bounds = array<i64: 1, 4, 2, 128>}, {transform_indices = @transform_2, window_bounds = array<i64: 1, 4, 128>}, {transform_indices = @transform_3, window_bounds = array<i64: 1, 4, 128>}, {transform_indices = @transform_4, window_bounds = array<i64: 1, 4, 128>}]} {
    %c0_i32 = arith.constant 0 : i32
    %0 = arith.cmpi eq, %arg1, %c0_i32 : i32
    %1 = arith.extui %0 : i1 to i32
    %c0_i32_0 = arith.constant 0 : i32
    %2 = arith.cmpi ne, %1, %c0_i32_0 : i32
    scf.if %2 {
      %cst_28 = arith.constant 0.000000e+00 : f32
      %29 = vector.broadcast %cst_28 : f32 to vector<4x128xf32>
      %c0_29 = arith.constant 0 : index
      %c0_30 = arith.constant 0 : index
      %c0_31 = arith.constant 0 : index
      %30 = vector.load %arg4[%c0_29, %c0_30, %c0_31] : memref<1x4x128xf32, #tpu.memory_space<vmem>>, vector<1x4x128xf32>
      %31 = vector.shape_cast %30 : vector<1x4x128xf32> to vector<4x128xf32>
      %32 = vector.shape_cast %29 : vector<4x128xf32> to vector<1x4x128xf32>
      tpu.vector_store %arg4[%c0_29, %c0_30, %c0_31], %32 {strides = array<i32>} : memref<1x4x128xf32, #tpu.memory_space<vmem>>, vector<1x4x128xf32>,
      %cst_32 = arith.constant 0.000000e+00 : f32
      %33 = vector.broadcast %cst_32 : f32 to vector<4x128xf32>
      %c0_33 = arith.constant 0 : index
      %c0_34 = arith.constant 0 : index
      %c0_35 = arith.constant 0 : index
      %34 = vector.load %arg5[%c0_33, %c0_34, %c0_35] : memref<1x4x128xf32, #tpu.memory_space<vmem>>, vector<1x4x128xf32>
      %35 = vector.shape_cast %34 : vector<1x4x128xf32> to vector<4x128xf32>
      %36 = vector.shape_cast %33 : vector<4x128xf32> to vector<1x4x128xf32>
      tpu.vector_store %arg5[%c0_33, %c0_34, %c0_35], %36 {strides = array<i32>} : memref<1x4x128xf32, #tpu.memory_space<vmem>>, vector<1x4x128xf32>,
      %cst_36 = arith.constant 0.000000e+00 : f32
      %37 = vector.broadcast %cst_36 : f32 to vector<4x128xf32>
      %c0_37 = arith.constant 0 : index
      %c0_38 = arith.constant 0 : index
      %c0_39 = arith.constant 0 : index
      %38 = vector.load %arg6[%c0_37, %c0_38, %c0_39] : memref<1x4x128xf32, #tpu.memory_space<vmem>>, vector<1x4x128xf32>
      %39 = vector.shape_cast %38 : vector<1x4x128xf32> to vector<4x128xf32>
      %40 = vector.shape_cast %37 : vector<4x128xf32> to vector<1x4x128xf32>
      tpu.vector_store %arg6[%c0_37, %c0_38, %c0_39], %40 {strides = array<i32>} : memref<1x4x128xf32, #tpu.memory_space<vmem>>, vector<1x4x128xf32>,
    } else {
    }
    %c0 = arith.constant 0 : index
    %c0_1 = arith.constant 0 : index
    %c0_2 = arith.constant 0 : index
    %c0_3 = arith.constant 0 : index
    %3 = vector.load %arg2[%c0, %c0_1, %c0_2, %c0_3] : memref<1x4x2x128xf32, #tpu.memory_space<vmem>>, vector<1x4x2x128xf32>
    %4 = vector.shape_cast %3 : vector<1x4x2x128xf32> to vector<4x2x128xf32>
    %c0_4 = arith.constant 0 : index
    %c0_5 = arith.constant 0 : index
    %c0_6 = arith.constant 0 : index
    %c0_7 = arith.constant 0 : index
    %5 = vector.load %arg3[%c0_4, %c0_5, %c0_6, %c0_7] : memref<1x4x2x128xf32, #tpu.memory_space<vmem>>, vector<1x4x2x128xf32>
    %6 = vector.shape_cast %5 : vector<1x4x2x128xf32> to vector<4x2x128xf32>
    %c0_8 = arith.constant 0 : index
    %c0_9 = arith.constant 0 : index
    %c0_10 = arith.constant 0 : index
    %7 = vector.load %arg4[%c0_8, %c0_9, %c0_10] : memref<1x4x128xf32, #tpu.memory_space<vmem>>, vector<1x4x128xf32>
    %8 = vector.shape_cast %7 : vector<1x4x128xf32> to vector<4x128xf32>
    %cst = arith.constant dense<0.000000e+00> : vector<4x128xf32>
    %9 = vector.multi_reduction <add>, %4, %cst [1] : vector<4x2x128xf32> to vector<4x128xf32>
    %10 = arith.addf %8, %9 : vector<4x128xf32>
    %c0_11 = arith.constant 0 : index
    %c0_12 = arith.constant 0 : index
    %c0_13 = arith.constant 0 : index
    %11 = vector.load %arg4[%c0_11, %c0_12, %c0_13] : memref<1x4x128xf32, #tpu.memory_space<vmem>>, vector<1x4x128xf32>
    %12 = vector.shape_cast %11 : vector<1x4x128xf32> to vector<4x128xf32>
    %13 = vector.shape_cast %10 : vector<4x128xf32> to vector<1x4x128xf32>
    tpu.vector_store %arg4[%c0_11, %c0_12, %c0_13], %13 {strides = array<i32>} : memref<1x4x128xf32, #tpu.memory_space<vmem>>, vector<1x4x128xf32>,
    %c0_14 = arith.constant 0 : index
    %c0_15 = arith.constant 0 : index
    %c0_16 = arith.constant 0 : index
    %14 = vector.load %arg5[%c0_14, %c0_15, %c0_16] : memref<1x4x128xf32, #tpu.memory_space<vmem>>, vector<1x4x128xf32>
    %15 = vector.shape_cast %14 : vector<1x4x128xf32> to vector<4x128xf32>
    %cst_17 = arith.constant dense<0.000000e+00> : vector<4x128xf32>
    %16 = vector.multi_reduction <add>, %6, %cst_17 [1] : vector<4x2x128xf32> to vector<4x128xf32>
    %17 = arith.addf %15, %16 : vector<4x128xf32>
    %c0_18 = arith.constant 0 : index
    %c0_19 = arith.constant 0 : index
    %c0_20 = arith.constant 0 : index
    %18 = vector.load %arg5[%c0_18, %c0_19, %c0_20] : memref<1x4x128xf32, #tpu.memory_space<vmem>>, vector<1x4x128xf32>
    %19 = vector.shape_cast %18 : vector<1x4x128xf32> to vector<4x128xf32>
    %20 = vector.shape_cast %17 : vector<4x128xf32> to vector<1x4x128xf32>
    tpu.vector_store %arg5[%c0_18, %c0_19, %c0_20], %20 {strides = array<i32>} : memref<1x4x128xf32, #tpu.memory_space<vmem>>, vector<1x4x128xf32>,
    %c0_21 = arith.constant 0 : index
    %c0_22 = arith.constant 0 : index
    %c0_23 = arith.constant 0 : index
    %21 = vector.load %arg6[%c0_21, %c0_22, %c0_23] : memref<1x4x128xf32, #tpu.memory_space<vmem>>, vector<1x4x128xf32>
    %22 = vector.shape_cast %21 : vector<1x4x128xf32> to vector<4x128xf32>
    %23 = arith.mulf %4, %6 : vector<4x2x128xf32>
    %cst_24 = arith.constant dense<0.000000e+00> : vector<4x128xf32>
    %24 = vector.multi_reduction <add>, %23, %cst_24 [1] : vector<4x2x128xf32> to vector<4x128xf32>
    %25 = arith.addf %22, %24 : vector<4x128xf32>
    %c0_25 = arith.constant 0 : index
    %c0_26 = arith.constant 0 : index
    %c0_27 = arith.constant 0 : index
    %26 = vector.load %arg6[%c0_25, %c0_26, %c0_27] : memref<1x4x128xf32, #tpu.memory_space<vmem>>, vector<1x4x128xf32>
    %27 = vector.shape_cast %26 : vector<1x4x128xf32> to vector<4x128xf32>
    %28 = vector.shape_cast %25 : vector<4x128xf32> to vector<1x4x128xf32>
    tpu.vector_store %arg6[%c0_25, %c0_26, %c0_27], %28 {strides = array<i32>} : memref<1x4x128xf32, #tpu.memory_space<vmem>>, vector<1x4x128xf32>,
    return
  }
  func.func @transform_0(%arg0: i32, %arg1: i32) -> (i32, i32, i32, i32) {
    %c0_i32 = arith.constant 0 : i32
    %c0_i32_0 = arith.constant 0 : i32
    %c0_i32_1 = arith.constant 0 : i32
    return %arg0, %c0_i32, %arg1, %c0_i32_0 : i32, i32, i32, i32
  }
  func.func @transform_1(%arg0: i32, %arg1: i32) -> (i32, i32, i32, i32) {
    %c0_i32 = arith.constant 0 : i32
    %c0_i32_0 = arith.constant 0 : i32
    %c0_i32_1 = arith.constant 0 : i32
    return %arg0, %c0_i32, %arg1, %c0_i32_0 : i32, i32, i32, i32
  }
  func.func @transform_2(%arg0: i32, %arg1: i32) -> (i32, i32, i32) {
    %c0_i32 = arith.constant 0 : i32
    %c0_i32_0 = arith.constant 0 : i32
    %c0_i32_1 = arith.constant 0 : i32
    return %arg0, %c0_i32, %c0_i32_0 : i32, i32, i32
  }
  func.func @transform_3(%arg0: i32, %arg1: i32) -> (i32, i32, i32) {
    %c0_i32 = arith.constant 0 : i32
    %c0_i32_0 = arith.constant 0 : i32
    %c0_i32_1 = arith.constant 0 : i32
    return %arg0, %c0_i32, %c0_i32_0 : i32, i32, i32
  }
  func.func @transform_4(%arg0: i32, %arg1: i32) -> (i32, i32, i32) {
    %c0_i32 = arith.constant 0 : i32
    %c0_i32_0 = arith.constant 0 : i32
    %c0_i32_1 = arith.constant 0 : i32
    return %arg0, %c0_i32, %c0_i32_0 : i32, i32, i32
  }
}

</mosaic_0001>

<llo_original>
// kernel: dice_loss.1
$region0: #{dice_loss.1}
  #allocation0 [shape = 'u32[]', space=smem, size = 0x4, offset = 0x4, fixed_abs, tag = 'smem constant byte address 0x4 - core index']
  #allocation1 [shape = 'u32[144,128]{1,0:T(1,128)}', space=vmem, size = 0x12000, scoped, tag = 'internal scratch']
  %s0 = inlined_call_operand.vmem [shape: f32[2,4,2,128], index: 0, kind: input, shape index: {}]
  %s1 = inlined_call_operand.vmem [shape: f32[2,4,2,128], index: 1, kind: input, shape index: {}]
  %s2 = inlined_call_operand.vmem [shape: f32[2,4,128], index: 2, kind: output, shape index: {0}]
  %s3 = inlined_call_operand.vmem [shape: f32[2,4,128], index: 3, kind: output, shape index: {1}]
  %s4 = inlined_call_operand.vmem [shape: f32[2,4,128], index: 4, kind: output, shape index: {2}]
  %5 = xla_tuple %s2, %s3, %s4
  %s6 = sld [smem:[#allocation0]]
  $region61: #{dice_loss.1} parent=0
    _
  %s8 = ssub.s32 1, %s6
  %s9 = scalar_select 0, %s8, %s6
  loop: start=0, step=1, limit=4
  $region2: #{dice_loss.1} parent=0 // loop_pre_header
    _
  $region3: #{dice_loss.1} parent=0 // loop_header
    %s11 = sphi 0, %s15
    %p12 = scmp.ge.s32.totalorder %s11, 4
    %s18 = sphi 0, %s30
    %s19 = sphi 0, %s26
    %s20 = sphi 0, %s18
    %s21 = sphi 0, %s19
    %s22 = sphi 0, %s20
    %s23 = sphi 0, %s21
    %s35 = sphi 0, %s37
    %s38 = sphi 0, %s35
    %s39 = sphi 0, %s38
    %s55 = sphi 0, %s39
    %s63 = sphi 0, %s65
    %s66 = sphi 0, %s63
    %s67 = sphi 0, %s66
    %s83 = sphi 0, %s67
    %s89 = sphi 0, %s91
    %s92 = sphi 0, %s89
    %s93 = sphi 0, %s92
    %s109 = sphi 0, %s93
    %s115 = sphi 0, %s117
    %s118 = sphi 0, %s115
    %s119 = sphi 0, %s118
    %s135 = sphi 0, %s119
    %s141 = sphi 0, %s143
    %s144 = sphi 0, %s141
    %s145 = sphi 0, %s144
    %s161 = sphi 0, %s145
  $region4: #{dice_loss.1} parent=0 // loop_header_branch
    %14 = sbr.rel (%p12) target = $region8
  $region5: #{dice_loss.1} parent=0 // loop_body
    %s16 = ssub.s32 %s11, 1
    %s17 = ssub.s32 %s11, 2
    %s24 = sadd.s32 1, %s19
    %p25 = scmp.ge.s32.totalorder %s24, 1
    %s26 = scalar_select %p25, 0, %s24
    %s27 = sadd.s32 1, %s18
    %s28 = scalar_select %p25, %s27, %s18
    %p29 = scmp.ge.s32.totalorder %s28, 2
    %s30 = scalar_select %p29, 0, %s28
    %s31 = ssub.s32 %s18, %s30
    %s32 = ssub.s32 %s19, %s26
    %s33 = sor.u32 %s31, %s32
    %p34 = scmp.eq.s32.totalorder %s33, 0
    %s36 = sadd.s32 %s35, 1
    %s37 = scalar_select %p34, %s35, %s36
    %p40 = pneg %p34
    %p41 = scmp.eq.s32.totalorder %s11, 1
    %p42 = por %p40, %p41
    %p43 = scmp.ne.s32.totalorder %s35, %s38
    %p44 = scmp.eq.s32.totalorder %s11, 0
    %p45 = por %p43, %p44
    %p46 = scmp.ne.s32.totalorder %s35, %s38
    %p47 = scmp.eq.s32.totalorder %s16, 1
    %p48 = por %p46, %p47
    %p49 = scmp.ne.s32.totalorder %s38, %s39
    %p50 = scmp.eq.s32.totalorder %s16, 0
    %p51 = por %p49, %p50
    %p52 = scmp.ne.s32.totalorder %s38, %s39
    %p53 = scmp.eq.s32.totalorder %s17, 1
    %p54 = por %p52, %p53
    %p56 = scmp.ne.s32.totalorder %s39, %s55
    %p57 = scmp.eq.s32.totalorder %s17, 0
    %p58 = por %p56, %p57
    %s59 = ssub.s32 %s18, %s30
    %s60 = ssub.s32 %s19, %s26
    %s61 = sor.u32 %s59, %s60
    %p62 = scmp.eq.s32.totalorder %s61, 0
    %s64 = sadd.s32 %s63, 1
    %s65 = scalar_select %p62, %s63, %s64
    %p68 = pneg %p62
    %p69 = scmp.eq.s32.totalorder %s11, 1
    %p70 = por %p68, %p69
    %p71 = scmp.ne.s32.totalorder %s63, %s66
    %p72 = scmp.eq.s32.totalorder %s11, 0
    %p73 = por %p71, %p72
    %p74 = scmp.ne.s32.totalorder %s63, %s66
    %p75 = scmp.eq.s32.totalorder %s16, 1
    %p76 = por %p74, %p75
    %p77 = scmp.ne.s32.totalorder %s66, %s67
    %p78 = scmp.eq.s32.totalorder %s16, 0
    %p79 = por %p77, %p78
    %p80 = scmp.ne.s32.totalorder %s66, %s67
    %p81 = scmp.eq.s32.totalorder %s17, 1
    %p82 = por %p80, %p81
    %p84 = scmp.ne.s32.totalorder %s67, %s83
    %p85 = scmp.eq.s32.totalorder %s17, 0
    %p86 = por %p84, %p85
    %s87 = ssub.s32 %s18, %s30
    %p88 = scmp.eq.s32.totalorder %s87, 0
    %s90 = sadd.s32 %s89, 1
    %s91 = scalar_select %p88, %s89, %s90
    %p94 = pneg %p88
    %p95 = scmp.eq.s32.totalorder %s11, 1
    %p96 = por %p94, %p95
    %p97 = scmp.ne.s32.totalorder %s89, %s92
    %p98 = scmp.eq.s32.totalorder %s11, 0
    %p99 = por %p97, %p98
    %p100 = scmp.ne.s32.totalorder %s89, %s92
    %p101 = scmp.eq.s32.totalorder %s16, 1
    %p102 = por %p100, %p101
    %p103 = scmp.ne.s32.totalorder %s92, %s93
    %p104 = scmp.eq.s32.totalorder %s16, 0
    %p105 = por %p103, %p104
    %p106 = scmp.ne.s32.totalorder %s92, %s93
    %p107 = scmp.eq.s32.totalorder %s17, 1
    %p108 = por %p106, %p107
    %p110 = scmp.ne.s32.totalorder %s93, %s109
    %p111 = scmp.eq.s32.totalorder %s17, 0
    %p112 = por %p110, %p111
    %s113 = ssub.s32 %s18, %s30
    %p114 = scmp.eq.s32.totalorder %s113, 0
    %s116 = sadd.s32 %s115, 1
    %s117 = scalar_select %p114, %s115, %s116
    %p120 = pneg %p114
    %p121 = scmp.eq.s32.totalorder %s11, 1
    %p122 = por %p120, %p121
    %p123 = scmp.ne.s32.totalorder %s115, %s118
    %p124 = scmp.eq.s32.totalorder %s11, 0
    %p125 = por %p123, %p124
    %p126 = scmp.ne.s32.totalorder %s115, %s118
    %p127 = scmp.eq.s32.totalorder %s16, 1
    %p128 = por %p126, %p127
    %p129 = scmp.ne.s32.totalorder %s118, %s119
    %p130 = scmp.eq.s32.totalorder %s16, 0
    %p131 = por %p129, %p130
    %p132 = scmp.ne.s32.totalorder %s118, %s119
    %p133 = scmp.eq.s32.totalorder %s17, 1
    %p134 = por %p132, %p133
    %p136 = scmp.ne.s32.totalorder %s119, %s135
    %p137 = scmp.eq.s32.totalorder %s17, 0
    %p138 = por %p136, %p137
    %s139 = ssub.s32 %s18, %s30
    %p140 = scmp.eq.s32.totalorder %s139, 0
    %s142 = sadd.s32 %s141, 1
    %s143 = scalar_select %p140, %s141, %s142
    %p146 = pneg %p140
    %p147 = scmp.eq.s32.totalorder %s11, 1
    %p148 = por %p146, %p147
    %p149 = scmp.ne.s32.totalorder %s141, %s144
    %p150 = scmp.eq.s32.totalorder %s11, 0
    %p151 = por %p149, %p150
    %p152 = scmp.ne.s32.totalorder %s141, %s144
    %p153 = scmp.eq.s32.totalorder %s16, 1
    %p154 = por %p152, %p153
    %p155 = scmp.ne.s32.totalorder %s144, %s145
    %p156 = scmp.eq.s32.totalorder %s16, 0
    %p157 = por %p155, %p156
    %p158 = scmp.ne.s32.totalorder %s144, %s145
    %p159 = scmp.eq.s32.totalorder %s17, 1
    %p160 = por %p158, %p159
    %p162 = scmp.ne.s32.totalorder %s145, %s161
    %p163 = scmp.eq.s32.totalorder %s17, 0
    %p164 = por %p162, %p163
    %p165 = scmp.le.s32.totalorder 1, %s11
    %p166 = scmp.lt.s32.totalorder %s11, 3
    %p167 = pnand %p165, %p166
    %p168 = pneg %p167
    // Predicated region
    $region9: #{dice_loss.1} parent=5 // pred_check
      _
    $region10: #{dice_loss.1} parent=5 // pred_check_branch
      %170 = sbr.rel (%p167) target = $region12
    $region11: #{dice_loss.1} parent=5 // pred_region
      %s171 = ssub.s32 %s11, 1
    $region12: #{dice_loss.1} parent=5 // pred_fallthru
      _
    %p172 = scmp.lt.s32.totalorder %s11, 2
    // Predicated region
    $region13: #{dice_loss.1} parent=5 // pred_check
      %p173 = pneg %p172
    $region14: #{dice_loss.1} parent=5 // pred_check_branch
      %175 = sbr.rel (%p173) target = $region16
    $region15: #{dice_loss.1} parent=5 // pred_region
      // Predicated region
      $region17: #{dice_loss.1} parent=15 // pred_check
        %p176 = pneg %p45
      $region18: #{dice_loss.1} parent=15 // pred_check_branch
        %178 = sbr.rel (%p176) target = $region20
      $region19: #{dice_loss.1} parent=15 // pred_region
        %p179 = scmp.lt.s32.totalorder %s18, 1
        %s180 = scalar_select %p179, %s18, 1
        %p181 = scmp.lt.s32.totalorder %s19, 0
        %s182 = scalar_select %p181, %s19, 0
        %s183 = smul.addr %s180, 4
        %s184 = sadd.s32 %s182, %s183
        %s185 = smul.addr %s184, 2
        %s186 = scalar_lea.vmem %s0, %s185
      $region20: #{dice_loss.1} parent=15 // pred_fallthru
        _
      // Predicated region
      $region21: #{dice_loss.1} parent=15 // pred_check
        %p187 = pneg %p73
      $region22: #{dice_loss.1} parent=15 // pred_check_branch
        %189 = sbr.rel (%p187) target = $region24
      $region23: #{dice_loss.1} parent=15 // pred_region
        %p190 = scmp.lt.s32.totalorder %s18, 1
        %s191 = scalar_select %p190, %s18, 1
        %p192 = scmp.lt.s32.totalorder %s19, 0
        %s193 = scalar_select %p192, %s19, 0
        %s194 = smul.addr %s191, 4
        %s195 = sadd.s32 %s193, %s194
        %s196 = smul.addr %s195, 2
        %s197 = scalar_lea.vmem %s1, %s196
      $region24: #{dice_loss.1} parent=15 // pred_fallthru
        _
    $region16: #{dice_loss.1} parent=5 // pred_fallthru
      _
    %p198 = scmp.le.s32.totalorder 1, %s11
    %p199 = scmp.lt.s32.totalorder %s11, 3
    %p200 = pnand %p198, %p199
    %p201 = pneg %p200
    // Predicated region
    $region25: #{dice_loss.1} parent=5 // pred_check
      _
    $region26: #{dice_loss.1} parent=5 // pred_check_branch
      %203 = sbr.rel (%p200) target = $region28
    $region27: #{dice_loss.1} parent=5 // pred_region
      %s204 = ssub.s32 %s11, 1
      %p205 = scmp.lt.s32.totalorder %s20, 1
      %s206 = scalar_select %p205, %s20, 1
      %p207 = scmp.lt.s32.totalorder %s21, 0
      %s208 = scalar_select %p207, %s21, 0
      %s209 = smul.addr %s206, 4
      %s210 = sadd.s32 %s208, %s209
      %s211 = smul.addr %s210, 2
      %s212 = scalar_lea.vmem %s0, %s211
      %p213 = pneg %p51
      %p214 = pneg %p48
      %p215 = scmp.lt.s32.totalorder %s20, 1
      %s216 = scalar_select %p215, %s20, 1
      %p217 = scmp.lt.s32.totalorder %s21, 0
      %s218 = scalar_select %p217, %s21, 0
      %s219 = smul.addr %s216, 4
      %s220 = sadd.s32 %s218, %s219
      %s221 = smul.addr %s220, 2
      %s222 = scalar_lea.vmem %s1, %s221
      %p223 = pneg %p79
      %p224 = pneg %p76
      %p225 = pneg %p105
      %p226 = pneg %p102
      %p227 = scmp.lt.s32.totalorder %s20, 1
      %s228 = scalar_select %p227, %s20, 1
      %s229 = smul.addr %s228, 4
      %s230 = scalar_lea.vmem %s2, %s229
      %p231 = pneg %p131
      %p232 = pneg %p128
      %p233 = scmp.lt.s32.totalorder %s20, 1
      %s234 = scalar_select %p233, %s20, 1
      %s235 = smul.addr %s234, 4
      %s236 = scalar_lea.vmem %s3, %s235
      %p237 = pneg %p157
      %p238 = pneg %p154
      %p239 = scmp.lt.s32.totalorder %s20, 1
      %s240 = scalar_select %p239, %s20, 1
      %s241 = smul.addr %s240, 4
      %s242 = scalar_lea.vmem %s4, %s241
      %p243 = scmp.lt.s32.totalorder %s20, 1
      %s244 = scalar_select %p243, %s20, 1
      %p245 = scmp.lt.s32.totalorder %s21, 0
      %s246 = scalar_select %p245, %s21, 0
      %s247 = smul.addr %s244, 4
      %s248 = sadd.s32 %s246, %s247
      %s249 = smul.addr %s248, 2
      %s250 = scalar_lea.vmem %s0, %s249
      %p251 = scmp.lt.s32.totalorder %s20, 1
      %s252 = scalar_select %p251, %s20, 1
      %p253 = scmp.lt.s32.totalorder %s21, 0
      %s254 = scalar_select %p253, %s21, 0
      %s255 = smul.addr %s252, 4
      %s256 = sadd.s32 %s254, %s255
      %s257 = smul.addr %s256, 2
      %s258 = scalar_lea.vmem %s1, %s257
      %p259 = scmp.lt.s32.totalorder %s20, 1
      %s260 = scalar_select %p259, %s20, 1
      %s261 = smul.addr %s260, 4
      %s262 = scalar_lea.vmem %s2, %s261
      %p263 = scmp.lt.s32.totalorder %s20, 1
      %s264 = scalar_select %p263, %s20, 1
      %s265 = smul.addr %s264, 4
      %s266 = scalar_lea.vmem %s3, %s265
      %p267 = scmp.lt.s32.totalorder %s20, 1
      %s268 = scalar_select %p267, %s20, 1
      %s269 = smul.addr %s268, 4
      %s270 = scalar_lea.vmem %s4, %s269
      %p271 = scmp.eq.s32.totalorder %s21, 0
      // Predicated region
      $region29: #{dice_loss.1} parent=27 // pred_check
        %p272 = pneg %p271
      $region30: #{dice_loss.1} parent=27 // pred_check_branch
        %274 = sbr.rel (%p272) target = $region32
      $region31: #{dice_loss.1} parent=27 // pred_region
        %275 = vst [vmem:[%s262] sm:$0xf] 0.0
        %276 = vst [vmem:[%s266] sm:$0xf] 0.0
        %277 = vst [vmem:[%s270] sm:$0xf] 0.0
      $region32: #{dice_loss.1} parent=27 // pred_fallthru
        _
      %v278 = vld [vmem:[%s250] sm:$0x3]
      %v279 = vld [vmem:[%s250 + $0x2] sm:$0x3]
      %v280 = vld [vmem:[%s250 + $0x4] sm:$0x3]
      %v281 = vld [vmem:[%s250 + $0x6] sm:$0x3]
      %v282 = vld [vmem:[%s258] sm:$0x3]
      %v283 = vld [vmem:[%s258 + $0x2] sm:$0x3]
      %v284 = vld [vmem:[%s258 + $0x4] sm:$0x3]
      %v285 = vld [vmem:[%s258 + $0x6] sm:$0x3]
      %v286 = vld [vmem:[%s262] sm:$0xf]
      %vm287 = vcmask 1041408
      %v288 = vsel %vm287, %v278, 0.0
      %v289 = vrot.slane %v288, 4
      %v290 = vadd.f32 %v288, %v289
      %v291 = vrot.slane %v290, 2
      %v292 = vadd.f32 %v290, %v291
      %v293 = vrot.slane %v292, 1
      %v294 = vadd.f32 %v292, %v293
      %v295 = vsel %vm287, %v279, 0.0
      %v296 = vrot.slane %v295, 4
      %v297 = vadd.f32 %v295, %v296
      %v298 = vrot.slane %v297, 2
      %v299 = vadd.f32 %v297, %v298
      %v300 = vrot.slane %v299, 1
      %v301 = vadd.f32 %v299, %v300
      %v302 = vsel %vm287, %v280, 0.0
      %v303 = vrot.slane %v302, 4
      %v304 = vadd.f32 %v302, %v303
      %v305 = vrot.slane %v304, 2
      %v306 = vadd.f32 %v304, %v305
      %v307 = vrot.slane %v306, 1
      %v308 = vadd.f32 %v306, %v307
      %v309 = vsel %vm287, %v281, 0.0
      %v310 = vrot.slane %v309, 4
      %v311 = vadd.f32 %v309, %v310
      %v312 = vrot.slane %v311, 2
      %v313 = vadd.f32 %v311, %v312
      %v314 = vrot.slane %v313, 1
      %v315 = vadd.f32 %v313, %v314
      %vm320 = vcmask 1041409
      %v321 = vsel %vm320, %v301, %v294
      %vm322 = vcmask 1042434
      %v323 = vsel %vm322, %v308, %v321
      %vm324 = vcmask 1043459
      %v325 = vsel %vm324, %v315, %v323
      %v327 = vadd.f32 %v286, %v325
      %328 = vst [vmem:[%s262] sm:$0xf] %v327
      %v329 = vld [vmem:[%s266] sm:$0xf]
      %v330 = vsel %vm287, %v282, 0.0
      %v331 = vrot.slane %v330, 4
      %v332 = vadd.f32 %v330, %v331
      %v333 = vrot.slane %v332, 2
      %v334 = vadd.f32 %v332, %v333
      %v335 = vrot.slane %v334, 1
      %v336 = vadd.f32 %v334, %v335
      %v337 = vsel %vm287, %v283, 0.0
      %v338 = vrot.slane %v337, 4
      %v339 = vadd.f32 %v337, %v338
      %v340 = vrot.slane %v339, 2
      %v341 = vadd.f32 %v339, %v340
      %v342 = vrot.slane %v341, 1
      %v343 = vadd.f32 %v341, %v342
      %v344 = vsel %vm287, %v284, 0.0
      %v345 = vrot.slane %v344, 4
      %v346 = vadd.f32 %v344, %v345
      %v347 = vrot.slane %v346, 2
      %v348 = vadd.f32 %v346, %v347
      %v349 = vrot.slane %v348, 1
      %v350 = vadd.f32 %v348, %v349
      %v351 = vsel %vm287, %v285, 0.0
      %v352 = vrot.slane %v351, 4
      %v353 = vadd.f32 %v351, %v352
      %v354 = vrot.slane %v353, 2
      %v355 = vadd.f32 %v353, %v354
      %v356 = vrot.slane %v355, 1
      %v357 = vadd.f32 %v355, %v356
      %v362 = vsel %vm320, %v343, %v336
      %v363 = vsel %vm322, %v350, %v362
      %v364 = vsel %vm324, %v357, %v363
      %v366 = vadd.f32 %v329, %v364
      %367 = vst [vmem:[%s266] sm:$0xf] %v366
      %v368 = vld [vmem:[%s270] sm:$0xf]
      %v369 = vmul.f32 %v278, %v282
      %v370 = vmul.f32 %v279, %v283
      %v371 = vmul.f32 %v280, %v284
      %v372 = vmul.f32 %v281, %v285
      %v373 = vsel %vm287, %v369, 0.0
      %v374 = vrot.slane %v373, 4
      %v375 = vadd.f32 %v373, %v374
      %v376 = vrot.slane %v375, 2
      %v377 = vadd.f32 %v375, %v376
      %v378 = vrot.slane %v377, 1
      %v379 = vadd.f32 %v377, %v378
      %v380 = vsel %vm287, %v370, 0.0
      %v381 = vrot.slane %v380, 4
      %v382 = vadd.f32 %v380, %v381
      %v383 = vrot.slane %v382, 2
      %v384 = vadd.f32 %v382, %v383
      %v385 = vrot.slane %v384, 1
      %v386 = vadd.f32 %v384, %v385
      %v387 = vsel %vm287, %v371, 0.0
      %v388 = vrot.slane %v387, 4
      %v389 = vadd.f32 %v387, %v388
      %v390 = vrot.slane %v389, 2
      %v391 = vadd.f32 %v389, %v390
      %v392 = vrot.slane %v391, 1
      %v393 = vadd.f32 %v391, %v392
      %v394 = vsel %vm287, %v372, 0.0
      %v395 = vrot.slane %v394, 4
      %v396 = vadd.f32 %v394, %v395
      %v397 = vrot.slane %v396, 2
      %v398 = vadd.f32 %v396, %v397
      %v399 = vrot.slane %v398, 1
      %v400 = vadd.f32 %v398, %v399
      %v405 = vsel %vm320, %v386, %v379
      %v406 = vsel %vm322, %v393, %v405
      %v407 = vsel %vm324, %v400, %v406
      %v409 = vadd.f32 %v368, %v407
      %410 = vst [vmem:[%s270] sm:$0xf] %v409
      %p411 = scmp.lt.s32.totalorder %s20, 1
      %s412 = scalar_select %p411, %s20, 1
      %s413 = smul.addr %s412, 4
      %s414 = scalar_lea.vmem %s2, %s413
      %p415 = scmp.lt.s32.totalorder %s20, 1
      %s416 = scalar_select %p415, %s20, 1
      %s417 = smul.addr %s416, 4
      %s418 = scalar_lea.vmem %s3, %s417
      %p419 = scmp.lt.s32.totalorder %s20, 1
      %s420 = scalar_select %p419, %s20, 1
      %s421 = smul.addr %s420, 4
      %s422 = scalar_lea.vmem %s4, %s421
      // Predicated region
      $region33: #{dice_loss.1} parent=27 // pred_check
        %p423 = pneg %p102
      $region34: #{dice_loss.1} parent=27 // pred_check_branch
        %425 = sbr.rel (%p423) target = $region36
      $region35: #{dice_loss.1} parent=27 // pred_region
        _
      $region36: #{dice_loss.1} parent=27 // pred_fallthru
        _
      // Predicated region
      $region37: #{dice_loss.1} parent=27 // pred_check
        %p426 = pneg %p128
      $region38: #{dice_loss.1} parent=27 // pred_check_branch
        %428 = sbr.rel (%p426) target = $region40
      $region39: #{dice_loss.1} parent=27 // pred_region
        _
      $region40: #{dice_loss.1} parent=27 // pred_fallthru
        _
      // Predicated region
      $region41: #{dice_loss.1} parent=27 // pred_check
        %p429 = pneg %p154
      $region42: #{dice_loss.1} parent=27 // pred_check_branch
        %431 = sbr.rel (%p429) target = $region44
      $region43: #{dice_loss.1} parent=27 // pred_region
        _
      $region44: #{dice_loss.1} parent=27 // pred_fallthru
        _
    $region28: #{dice_loss.1} parent=5 // pred_fallthru
      _
    %p432 = scmp.le.s32.totalorder 2, %s11
    // Predicated region
    $region45: #{dice_loss.1} parent=5 // pred_check
      %p433 = pneg %p432
    $region46: #{dice_loss.1} parent=5 // pred_check_branch
      %435 = sbr.rel (%p433) target = $region48
    $region47: #{dice_loss.1} parent=5 // pred_region
      %s436 = ssub.s32 %s11, 2
      // Predicated region
      $region49: #{dice_loss.1} parent=47 // pred_check
        %p437 = pneg %p108
      $region50: #{dice_loss.1} parent=47 // pred_check_branch
        %439 = sbr.rel (%p437) target = $region52
      $region51: #{dice_loss.1} parent=47 // pred_region
        %p440 = scmp.lt.s32.totalorder %s22, 1
        %s441 = scalar_select %p440, %s22, 1
        %s442 = smul.addr %s441, 4
        %s443 = scalar_lea.vmem %s2, %s442
      $region52: #{dice_loss.1} parent=47 // pred_fallthru
        _
      // Predicated region
      $region53: #{dice_loss.1} parent=47 // pred_check
        %p444 = pneg %p134
      $region54: #{dice_loss.1} parent=47 // pred_check_branch
        %446 = sbr.rel (%p444) target = $region56
      $region55: #{dice_loss.1} parent=47 // pred_region
        %p447 = scmp.lt.s32.totalorder %s22, 1
        %s448 = scalar_select %p447, %s22, 1
        %s449 = smul.addr %s448, 4
        %s450 = scalar_lea.vmem %s3, %s449
      $region56: #{dice_loss.1} parent=47 // pred_fallthru
        _
      // Predicated region
      $region57: #{dice_loss.1} parent=47 // pred_check
        %p451 = pneg %p160
      $region58: #{dice_loss.1} parent=47 // pred_check_branch
        %453 = sbr.rel (%p451) target = $region60
      $region59: #{dice_loss.1} parent=47 // pred_region
        %p454 = scmp.lt.s32.totalorder %s22, 1
        %s455 = scalar_select %p454, %s22, 1
        %s456 = smul.addr %s455, 4
        %s457 = scalar_lea.vmem %s4, %s456
      $region60: #{dice_loss.1} parent=47 // pred_fallthru
        _
    $region48: #{dice_loss.1} parent=5 // pred_fallthru
      _
  $region6: #{dice_loss.1} parent=0 // loop_footer
    %s15 = sadd.s32 1, %s11
  $region7: #{dice_loss.1} parent=0 // loop_footer_branch
    %10 = sbr.rel target = $region3
  $region8: #{dice_loss.1} parent=0 // loop_exit
    _

</llo_original>
